<compile_context>
chip_gen: v7x
topology: tpu7x:2x2x1
jax: 0.10.0
libtpu: 0.0.40
codegen_flags: <defaults>
</compile_context>

<pallas_src>
import jax
import jax.numpy as jnp
from jax import lax
from jax.experimental import pallas as pl
from jax.experimental.pallas import tpu as pltpu


_LANE = 128
_SUBLANE = 8
_PAD_DIST = 1e30  # squared-distance sentinel for padded points


def _round_up(x, m):
    return (x + m - 1) // m * m


def _augment(points, n_pad, k_pad, role):
    """(B, C, N) f32 -> (B, k_pad, n_pad) MXU-ready augmented cloud (lane-dense).

    query rows  : [ x_c ..., ||x||^2, 1, 0, ...]
    target rows : [-2*y_c ..., 1, ||y||^2, 0, ...]
    so  sum_k query[k, i] * target[k, j] = ||x_i||^2 + ||y_j||^2 - 2 x_i.y_j.
    Padded points (both roles) get ||.||^2 = 1e30 so they never win either min.
    """
    B, C, N = points.shape
    if n_pad > N:
        points = jnp.pad(points, ((0, 0), (0, 0), (0, n_pad - N)))
    sq = jnp.sum(points * points, axis=1, keepdims=True)          # (B, 1, n_pad)
    if n_pad > N:
        col = jnp.arange(n_pad, dtype=jnp.int32)[None, None, :]
        sq = jnp.where(col < N, sq, jnp.float32(_PAD_DIST))
    ones = jnp.ones_like(sq)
    if role == "target":
        aug = jnp.concatenate([-2.0 * points, ones, sq], axis=1)  # (B, C+2, n_pad)
    else:
        aug = jnp.concatenate([points, sq, ones], axis=1)         # (B, C+2, n_pad)
    if k_pad > C + 2:
        aug = jnp.pad(aug, ((0, 0), (0, k_pad - (C + 2)), (0, 0)))
    return aug


def _make_kernel(tq, ts, n_strips, precision):
    """Fused dist1/dist2 kernel for one (batch, query-tile) grid step.

    Refs:
      q_ref  : (1, K, tq)    augmented query block (cloud 1), lane-dense points
      t_ref  : (1, K, Mp)    full augmented target cloud (cloud 2), resident
      o1_ref : (1, 1, tq)    dist1 for this query tile (written every step)
      o2_ref : (1, 8, Mp)    dist2 partial column-mins, resident accumulator
                             across the query-tile ("arbitrary") grid axis
      acc_ref: (tq, 128)     running row-min scratch for this query tile
    """
    dn = (((0,), (0,)), ((), ()))

    def strip_step(q, t_ref, o2_ref, acc_ref, off):
        t = t_ref[0, :, pl.ds(off, ts)]                              # (K, ts)
        d = lax.dot_general(q, t, dn,
                            precision=precision,
                            preferred_element_type=jnp.float32)      # (tq, ts)

        # dist1: sequential 128-lane-chunk fold straight into the running
        # row-min accumulator (no full-tile tree intermediates).
        m = d[:, 0:_LANE]
        for c in range(1, ts // _LANE):
            m = jnp.minimum(m, d[:, c * _LANE:(c + 1) * _LANE])
        acc_ref[...] = jnp.minimum(acc_ref[...], m)

        # dist2: sequential 8-sublane-chunk fold (tile-aligned slices, VPU
        # elementwise mins), then min into the resident column-min slice.
        c2 = d[0:_SUBLANE, :]
        for r in range(1, tq // _SUBLANE):
            c2 = jnp.minimum(c2, d[r * _SUBLANE:(r + 1) * _SUBLANE, :])
        cur = o2_ref[0, :, pl.ds(off, ts)]
        o2_ref[0, :, pl.ds(off, ts)] = jnp.minimum(cur, c2)

    def kernel(q_ref, t_ref, o1_ref, o2_ref, acc_ref):
        i = pl.program_id(1)

        # Initialize the resident dist2 accumulator once per batch.
        @pl.when(i == 0)
        def _():
            o2_ref[...] = jnp.full(o2_ref.shape, _PAD_DIST, dtype=o2_ref.dtype)

        # Fresh row-min accumulator for this query tile.
        acc_ref[...] = jnp.full(acc_ref.shape, _PAD_DIST, dtype=acc_ref.dtype)

        q = q_ref[0]                                                 # (K, tq)

        if n_strips <= 8:
            # Short trip count: unroll with static offsets.
            for s in range(n_strips):
                strip_step(q, t_ref, o2_ref, acc_ref, s * ts)
        else:
            def body(s, carry):
                strip_step(q, t_ref, o2_ref, acc_ref,
                           pl.multiple_of(s * ts, ts))
                return carry
            lax.fori_loop(0, n_strips, body, None)

        # Single cross-lane (XLU) reduce per query tile; clamp FP round-off
        # from the norm expansion (clamp-after-min == clamp-before-min).
        o1_ref[0, 0, :] = jnp.maximum(jnp.min(acc_ref[...], axis=1), 0.0)

    return kernel


def _fused_nearest(q_aug, t_aug, *, tq, ts, precision):
    """q_aug: (B, K, Np), t_aug: (B, K, Mp).

    Returns:
      row_min  : (B, Np)    min_j d(q_i, t_j), clamped >= 0
      col_part : (B, 8, Mp) 8-sublane partial column mins (host reduces axis 1)
    """
    B, K, Np = q_aug.shape
    _, _, Mp = t_aug.shape
    n_strips = Mp // ts
    grid = (B, Np // tq)

    # Explicit VMEM budget: double-buffered IO blocks + scratch + strip
    # temporaries, with 2x headroom.  Clamp to [32 MiB, 48 MiB] -- the upper
    # clamp keeps us safely under v7x's 64 MiB physical VMEM.
    need = 4 * (2 * K * (tq + Mp)                      # in blocks (x2 buffers)
                + 2 * (tq + _SUBLANE * Mp)             # out blocks (x2 buffers)
                + tq * _LANE                           # row-min scratch
                + 2 * tq * ts + _SUBLANE * ts + tq * _LANE)  # strip temporaries
    vmem_limit = int(min(max(2 * need, 32 << 20), 48 << 20))

    kernel = _make_kernel(tq, ts, n_strips, precision)
    o1, o2 = pl.pallas_call(
        kernel,
        out_shape=(jax.ShapeDtypeStruct((B, 1, Np), jnp.float32),
                   jax.ShapeDtypeStruct((B, _SUBLANE, Mp), jnp.float32)),
        grid_spec=pltpu.PrefetchScalarGridSpec(
            num_scalar_prefetch=0,
            grid=grid,
            in_specs=[
                pl.BlockSpec((1, K, tq), lambda b, i: (b, 0, i)),
                # Full target cloud; block index constant across i -> fetched
                # once per batch, resident in VMEM.
                pl.BlockSpec((1, K, Mp), lambda b, i: (b, 0, 0)),
            ],
            out_specs=[
                pl.BlockSpec((1, 1, tq), lambda b, i: (b, 0, i)),
                # dist2 accumulator: constant block index across the query
                # ("arbitrary") axis -> resident, written back per batch.
                pl.BlockSpec((1, _SUBLANE, Mp), lambda b, i: (b, 0, 0)),
            ],
            scratch_shapes=[pltpu.VMEM((tq, _LANE), jnp.float32)],
        ),
        compiler_params=pltpu.CompilerParams(
            dimension_semantics=("parallel", "arbitrary"),
            vmem_limit_bytes=vmem_limit,
        ),
    )(q_aug, t_aug)
    return o1[:, 0, :], o2


def chamfer_distance(xyz1, xyz2, transpose=True, reduce_mean=True, return_raw=False,
                     *, tile_q=512, target_strip=512, precision=None):
    """Mirrors ChamferDistance.forward.

    xyz1/xyz2: (B, 3, N)/(B, 3, M) when transpose=True (BCN), else BNC.
    tile_q:        query points per grid step (multiple of 128; 512 is a good
                   default on v5e/v6e/v7x -- the kernel is not HBM-bound, so
                   bigger tiles only inflate VMEM pressure).
    target_strip:  target points per in-kernel MXU strip (256-512 recommended).
    precision:     optional lax.Precision for the distance contraction.
    """
    xyz1 = jnp.asarray(xyz1, dtype=jnp.float32)
    xyz2 = jnp.asarray(xyz2, dtype=jnp.float32)
    if xyz1.ndim == 2:
        xyz1 = xyz1[None]
    if xyz2.ndim == 2:
        xyz2 = xyz2[None]
    if not transpose:
        # Inputs already BNC; the kernel consumes lane-dense BCN.
        xyz1 = jnp.swapaxes(xyz1, 1, 2)
        xyz2 = jnp.swapaxes(xyz2, 1, 2)
    B, C, N = xyz1.shape
    _, _, M = xyz2.shape

    tq = min(_round_up(tile_q, _LANE), _round_up(N, _LANE))
    ts = min(_round_up(target_strip, _LANE), _round_up(M, _LANE))
    Np = _round_up(N, tq)
    Mp = _round_up(M, ts)
    k_pad = _round_up(C + 2, _SUBLANE)

    # Host-side augmentation: one O(B*N) + O(B*M) pass (negligible vs O(N*M)).
    q1 = _augment(xyz1, Np, k_pad, role="query")    # (B, k_pad, Np)
    t2 = _augment(xyz2, Mp, k_pad, role="target")   # (B, k_pad, Mp)

    d1, d2_part = _fused_nearest(q1, t2, tq=tq, ts=ts, precision=precision)
    dist1 = d1[:, :N]                                                 # (B, N)
    dist2 = jnp.maximum(jnp.min(d2_part, axis=1), 0.0)[:, :M]         # (B, M)

    if return_raw:
        if reduce_mean:
            return dist1.mean(), dist2.mean()
        return dist1, dist2

    chamfer = (dist1.mean(axis=1) + dist2.mean(axis=1)) / 2.0
    if reduce_mean:
        chamfer = chamfer.mean()
    return chamfer


def _chamfer_reference(xyz1, xyz2):
    """Pure-JAX brute-force reference; inputs (B, 3, N)/(B, 3, M)."""
    a = jnp.swapaxes(xyz1, 1, 2)                     # (B, N, 3)
    b = jnp.swapaxes(xyz2, 1, 2)                     # (B, M, 3)
    diff = a[:, :, None, :] - b[:, None, :, :]       # (B, N, M, 3)
    d = jnp.sum(diff * diff, axis=-1)                # (B, N, M)
    d1 = d.min(axis=2)                               # (B, N)
    d2 = d.min(axis=1)                               # (B, M)
    chamfer = ((d1.mean(axis=1) + d2.mean(axis=1)) / 2.0).mean()
    return d1, d2, chamfer


if __name__ == "__main__":
    key = jax.random.PRNGKey(0)
    k1, k2 = jax.random.split(key)
    B, N, M = 2, 64, 96   # small, non-multiples of 128 to exercise padding/masking
    xyz1 = jax.random.normal(k1, (B, 3, N), dtype=jnp.float32)
    xyz2 = jax.random.normal(k2, (B, 3, M), dtype=jnp.float32)

    out = chamfer_distance(xyz1, xyz2)                                      # scalar
    d1, d2 = chamfer_distance(xyz1, xyz2, reduce_mean=False, return_raw=True)
    out = jax.block_until_ready(out)
    d1 = jax.block_until_ready(d1)
    d2 = jax.block_until_ready(d2)

    r1, r2, ref = _chamfer_reference(xyz1, xyz2)
    assert jnp.allclose(d1, r1, rtol=1e-4, atol=1e-5), "dist1 mismatch"
    assert jnp.allclose(d2, r2, rtol=1e-4, atol=1e-5), "dist2 mismatch"
    assert jnp.allclose(out, ref, rtol=1e-4, atol=1e-5), (out, ref)

    print("KERNEL_OK")
</pallas_src>

<mosaic_0001>
module attributes {stable_mosaic.version = 11 : i64} {
  func.func @kernel(%arg0: i32, %arg1: i32, %arg2: memref<1x8x128xf32, #tpu.memory_space<vmem>>, %arg3: memref<1x8x128xf32, #tpu.memory_space<vmem>>, %arg4: memref<1x1x128xf32, #tpu.memory_space<vmem>>, %arg5: memref<1x8x128xf32, #tpu.memory_space<vmem>>, %arg6: memref<128x128xf32, #tpu.memory_space<vmem>>) attributes {dimension_semantics = [#tpu.dimension_semantics<parallel>, #tpu.dimension_semantics<arbitrary>], iteration_bounds = array<i64: 2, 1>, scalar_prefetch = 0 : i64, scratch_operands = 1 : i64, tpu.core_type = #tpu.core_type<tc>, window_params = [{transform_indices = @transform_0, window_bounds = array<i64: 1, 8, 128>}, {transform_indices = @transform_1, window_bounds = array<i64: 1, 8, 128>}, {transform_indices = @transform_2, window_bounds = array<i64: 1, 1, 128>}, {transform_indices = @transform_3, window_bounds = array<i64: 1, 8, 128>}]} {
    %c0_i32 = arith.constant 0 : i32
    %0 = arith.cmpi eq, %arg1, %c0_i32 : i32
    %1 = arith.extui %0 : i1 to i32
    %c0_i32_0 = arith.constant 0 : i32
    %2 = arith.cmpi ne, %1, %c0_i32_0 : i32
    scf.if %2 {
      %cst_26 = arith.constant 1.000000e+30 : f32
      %57 = vector.broadcast %cst_26 : f32 to vector<1x8x128xf32>
      %c0_27 = arith.constant 0 : index
      %c0_28 = arith.constant 0 : index
      %c0_29 = arith.constant 0 : index
      %58 = vector.load %arg5[%c0_27, %c0_28, %c0_29] : memref<1x8x128xf32, #tpu.memory_space<vmem>>, vector<1x8x128xf32>
      tpu.vector_store %arg5[%c0_27, %c0_28, %c0_29], %57 {strides = array<i32>} : memref<1x8x128xf32, #tpu.memory_space<vmem>>, vector<1x8x128xf32>,
    } else {
    }
    %cst = arith.constant 1.000000e+30 : f32
    %3 = vector.broadcast %cst : f32 to vector<128x128xf32>
    %c0 = arith.constant 0 : index
    %c0_1 = arith.constant 0 : index
    %4 = vector.load %arg6[%c0, %c0_1] : memref<128x128xf32, #tpu.memory_space<vmem>>, vector<128x128xf32>
    tpu.vector_store %arg6[%c0, %c0_1], %3 {strides = array<i32>} : memref<128x128xf32, #tpu.memory_space<vmem>>, vector<128x128xf32>,
    %c0_2 = arith.constant 0 : index
    %c0_3 = arith.constant 0 : index
    %c0_4 = arith.constant 0 : index
    %5 = vector.load %arg2[%c0_2, %c0_3, %c0_4] : memref<1x8x128xf32, #tpu.memory_space<vmem>>, vector<1x8x128xf32>
    %6 = vector.shape_cast %5 : vector<1x8x128xf32> to vector<8x128xf32>
    %c0_5 = arith.constant 0 : index
    %c0_6 = arith.constant 0 : index
    %c0_7 = arith.constant 0 : index
    %7 = vector.load %arg3[%c0_5, %c0_6, %c0_7] : memref<1x8x128xf32, #tpu.memory_space<vmem>>, vector<1x8x128xf32>
    %8 = vector.shape_cast %7 : vector<1x8x128xf32> to vector<8x128xf32>
    %cst_8 = arith.constant dense<0.000000e+00> : vector<128x128xf32>
    %9 = tpu.matmul %6, %8, %cst_8 {dimension_numbers = #tpu.dot_dimension_numbers<[0], [0], [1], [1], [0, 1, 1, 1], [], []>} : vector<8x128xf32>, vector<8x128xf32>, vector<128x128xf32> -> vector<128x128xf32>
    %c0_9 = arith.constant 0 : index
    %c0_10 = arith.constant 0 : index
    %10 = vector.load %arg6[%c0_9, %c0_10] : memref<128x128xf32, #tpu.memory_space<vmem>>, vector<128x128xf32>
    %11 = arith.minimumf %10, %9 : vector<128x128xf32>
    %c0_11 = arith.constant 0 : index
    %c0_12 = arith.constant 0 : index
    %12 = vector.load %arg6[%c0_11, %c0_12] : memref<128x128xf32, #tpu.memory_space<vmem>>, vector<128x128xf32>
    tpu.vector_store %arg6[%c0_11, %c0_12], %11 {strides = array<i32>} : memref<128x128xf32, #tpu.memory_space<vmem>>, vector<128x128xf32>,
    %13 = vector.extract_strided_slice %9 {offsets = [0, 0], sizes = [8, 128], strides = [1, 1]} : vector<128x128xf32> to vector<8x128xf32>
    %14 = vector.extract_strided_slice %9 {offsets = [8, 0], sizes = [8, 128], strides = [1, 1]} : vector<128x128xf32> to vector<8x128xf32>
    %15 = arith.minimumf %13, %14 : vector<8x128xf32>
    %16 = vector.extract_strided_slice %9 {offsets = [16, 0], sizes = [8, 128], strides = [1, 1]} : vector<128x128xf32> to vector<8x128xf32>
    %17 = arith.minimumf %15, %16 : vector<8x128xf32>
    %18 = vector.extract_strided_slice %9 {offsets = [24, 0], sizes = [8, 128], strides = [1, 1]} : vector<128x128xf32> to vector<8x128xf32>
    %19 = arith.minimumf %17, %18 : vector<8x128xf32>
    %20 = vector.extract_strided_slice %9 {offsets = [32, 0], sizes = [8, 128], strides = [1, 1]} : vector<128x128xf32> to vector<8x128xf32>
    %21 = arith.minimumf %19, %20 : vector<8x128xf32>
    %22 = vector.extract_strided_slice %9 {offsets = [40, 0], sizes = [8, 128], strides = [1, 1]} : vector<128x128xf32> to vector<8x128xf32>
    %23 = arith.minimumf %21, %22 : vector<8x128xf32>
    %24 = vector.extract_strided_slice %9 {offsets = [48, 0], sizes = [8, 128], strides = [1, 1]} : vector<128x128xf32> to vector<8x128xf32>
    %25 = arith.minimumf %23, %24 : vector<8x128xf32>
    %26 = vector.extract_strided_slice %9 {offsets = [56, 0], sizes = [8, 128], strides = [1, 1]} : vector<128x128xf32> to vector<8x128xf32>
    %27 = arith.minimumf %25, %26 : vector<8x128xf32>
    %28 = vector.extract_strided_slice %9 {offsets = [64, 0], sizes = [8, 128], strides = [1, 1]} : vector<128x128xf32> to vector<8x128xf32>
    %29 = arith.minimumf %27, %28 : vector<8x128xf32>
    %30 = vector.extract_strided_slice %9 {offsets = [72, 0], sizes = [8, 128], strides = [1, 1]} : vector<128x128xf32> to vector<8x128xf32>
    %31 = arith.minimumf %29, %30 : vector<8x128xf32>
    %32 = vector.extract_strided_slice %9 {offsets = [80, 0], sizes = [8, 128], strides = [1, 1]} : vector<128x128xf32> to vector<8x128xf32>
    %33 = arith.minimumf %31, %32 : vector<8x128xf32>
    %34 = vector.extract_strided_slice %9 {offsets = [88, 0], sizes = [8, 128], strides = [1, 1]} : vector<128x128xf32> to vector<8x128xf32>
    %35 = arith.minimumf %33, %34 : vector<8x128xf32>
    %36 = vector.extract_strided_slice %9 {offsets = [96, 0], sizes = [8, 128], strides = [1, 1]} : vector<128x128xf32> to vector<8x128xf32>
    %37 = arith.minimumf %35, %36 : vector<8x128xf32>
    %38 = vector.extract_strided_slice %9 {offsets = [104, 0], sizes = [8, 128], strides = [1, 1]} : vector<128x128xf32> to vector<8x128xf32>
    %39 = arith.minimumf %37, %38 : vector<8x128xf32>
    %40 = vector.extract_strided_slice %9 {offsets = [112, 0], sizes = [8, 128], strides = [1, 1]} : vector<128x128xf32> to vector<8x128xf32>
    %41 = arith.minimumf %39, %40 : vector<8x128xf32>
    %42 = vector.extract_strided_slice %9 {offsets = [120, 0], sizes = [8, 128], strides = [1, 1]} : vector<128x128xf32> to vector<8x128xf32>
    %43 = arith.minimumf %41, %42 : vector<8x128xf32>
    %c0_13 = arith.constant 0 : index
    %c0_14 = arith.constant 0 : index
    %c0_15 = arith.constant 0 : index
    %44 = vector.load %arg5[%c0_13, %c0_14, %c0_15] : memref<1x8x128xf32, #tpu.memory_space<vmem>>, vector<1x8x128xf32>
    %45 = vector.shape_cast %44 : vector<1x8x128xf32> to vector<8x128xf32>
    %46 = arith.minimumf %45, %43 : vector<8x128xf32>
    %c0_16 = arith.constant 0 : index
    %c0_17 = arith.constant 0 : index
    %c0_18 = arith.constant 0 : index
    %47 = vector.load %arg5[%c0_16, %c0_17, %c0_18] : memref<1x8x128xf32, #tpu.memory_space<vmem>>, vector<1x8x128xf32>
    %48 = vector.shape_cast %47 : vector<1x8x128xf32> to vector<8x128xf32>
    %49 = vector.shape_cast %46 : vector<8x128xf32> to vector<1x8x128xf32>
    tpu.vector_store %arg5[%c0_16, %c0_17, %c0_18], %49 {strides = array<i32>} : memref<1x8x128xf32, #tpu.memory_space<vmem>>, vector<1x8x128xf32>,
    %c0_19 = arith.constant 0 : index
    %c0_20 = arith.constant 0 : index
    %50 = vector.load %arg6[%c0_19, %c0_20] : memref<128x128xf32, #tpu.memory_space<vmem>>, vector<128x128xf32>
    %cst_21 = arith.constant dense<0x7F800000> : vector<128xf32>
    %51 = vector.multi_reduction <minimumf>, %50, %cst_21 [1] : vector<128x128xf32> to vector<128xf32>
    %cst_22 = arith.constant 0.000000e+00 : f32
    %52 = vector.broadcast %cst_22 : f32 to vector<128xf32>
    %53 = arith.maximumf %51, %52 : vector<128xf32>
    %c0_23 = arith.constant 0 : index
    %c0_24 = arith.constant 0 : index
    %c0_25 = arith.constant 0 : index
    %54 = vector.load %arg4[%c0_23, %c0_24, %c0_25] : memref<1x1x128xf32, #tpu.memory_space<vmem>>, vector<1x1x128xf32>
    %55 = vector.shape_cast %54 : vector<1x1x128xf32> to vector<128xf32>
    %56 = vector.shape_cast %53 : vector<128xf32> to vector<1x1x128xf32>
    tpu.vector_store %arg4[%c0_23, %c0_24, %c0_25], %56 {strides = array<i32>} : memref<1x1x128xf32, #tpu.memory_space<vmem>>, vector<1x1x128xf32>,
    return
  }
  func.func @transform_0(%arg0: i32, %arg1: i32) -> (i32, i32, i32) {
    %c0_i32 = arith.constant 0 : i32
    %c0_i32_0 = arith.constant 0 : i32
    return %arg0, %c0_i32, %arg1 : i32, i32, i32
  }
  func.func @transform_1(%arg0: i32, %arg1: i32) -> (i32, i32, i32) {
    %c0_i32 = arith.constant 0 : i32
    %c0_i32_0 = arith.constant 0 : i32
    %c0_i32_1 = arith.constant 0 : i32
    return %arg0, %c0_i32, %c0_i32_0 : i32, i32, i32
  }
  func.func @transform_2(%arg0: i32, %arg1: i32) -> (i32, i32, i32) {
    %c0_i32 = arith.constant 0 : i32
    %c0_i32_0 = arith.constant 0 : i32
    return %arg0, %c0_i32, %arg1 : i32, i32, i32
  }
  func.func @transform_3(%arg0: i32, %arg1: i32) -> (i32, i32, i32) {
    %c0_i32 = arith.constant 0 : i32
    %c0_i32_0 = arith.constant 0 : i32
    %c0_i32_1 = arith.constant 0 : i32
    return %arg0, %c0_i32, %c0_i32_0 : i32, i32, i32
  }
}

</mosaic_0001>

<llo_original>
// kernel: tpu_custom_call.1
$region0: #{tpu_custom_call.1}
  #allocation0 [shape = 'u32[]', space=smem, size = 0x4, offset = 0x4, fixed_abs, tag = 'smem constant byte address 0x4 - core index']
  #allocation1 [shape = 'u32[144,128]{1,0:T(1,128)}', space=vmem, size = 0x12000, scoped, tag = 'internal scratch']
  #allocation2 [shape = 'f32[128,128]{1,0:T(8,128)}', space=vmem, size = 0x10000, scoped, tag = 'scratch operand']
  %s0 = inlined_call_operand.hbm [shape: f32[2,8,128], index: 0, kind: input, shape index: {}]
  %s1 = inlined_call_operand.hbm [shape: f32[2,8,128], index: 1, kind: input, shape index: {}]
  %s2 = inlined_call_operand.hbm [shape: f32[2,1,128], index: 2, kind: output, shape index: {0}]
  %s3 = inlined_call_operand.hbm [shape: f32[2,8,128], index: 3, kind: output, shape index: {1}]
  %4 = xla_tuple %s2, %s3
  %s5 = sld [smem:[#allocation0]]
  $region61: #{tpu_custom_call.1} parent=0
    _
  %s7 = ssub.s32 1, %s5
  %s8 = scalar_select 0, %s7, %s5
  $region1: #{tpu_custom_call.1} parent=0
    #allocation3 [shape = 'u8[8192]{0}', space=vmem, size = 0x2000, scoped, tag = 'input window, operand 0']
    #allocation4 [shape = 's32[2]{0}', space=sflag, size = 0x8, scoped, tag = 'scoped memory for tpu_custom_call.1']
    #allocation5 [shape = 's32[2]{0}', space=sflag, size = 0x8, scoped, tag = 'scoped memory for tpu_custom_call.1']
    #allocation6 [shape = 'u8[8192]{0}', space=vmem, size = 0x2000, scoped, tag = 'input window, operand 1']
    #allocation7 [shape = 's32[2]{0}', space=sflag, size = 0x8, scoped, tag = 'scoped memory for tpu_custom_call.1']
    #allocation8 [shape = 'u8[1024]{0}', space=vmem, size = 0x400, scoped, tag = 'output window, operand 0']
    #allocation9 [shape = 'u8[8192]{0}', space=vmem, size = 0x2000, scoped, tag = 'output window, operand 1']
    #allocation10 [shape = 's32[2]{0}', space=sflag, size = 0x8, scoped, tag = 'scoped memory for tpu_custom_call.1']
    %9 = vsyncpa [#allocation4], 0
    %s10 = scalar_lea.sflag [#allocation4], 1
    %11 = vsyncpa %s10, 0
    %12 = vsyncpa [#allocation7], 0
    %s13 = scalar_lea.sflag [#allocation7], 1
    %14 = vsyncpa %s13, 0
    %15 = vsyncpa [#allocation5], 0
    %s16 = scalar_lea.sflag [#allocation5], 1
    %17 = vsyncpa %s16, 0
    %18 = vsyncpa [#allocation10], 0
    %s19 = scalar_lea.sflag [#allocation10], 1
    %20 = vsyncpa %s19, 0
    loop: start=0, step=1, limit=4
    $region2: #{tpu_custom_call.1} parent=1 // loop_pre_header
      _
    $region3: #{tpu_custom_call.1} parent=1 // loop_header
      %s22 = sphi 0, %s26
      %p23 = scmp.ge.s32.totalorder %s22, 4
      %s29 = sphi 0, %s41
      %s30 = sphi 0, %s37
      %s31 = sphi 0, %s29
      %s32 = sphi 0, %s30
      %s33 = sphi 0, %s31
      %s34 = sphi 0, %s32
      %s46 = sphi 0, %s48
      %s49 = sphi 0, %s46
      %s50 = sphi 0, %s49
      %s66 = sphi 0, %s50
      %s72 = sphi 0, %s74
      %s75 = sphi 0, %s72
      %s76 = sphi 0, %s75
      %s92 = sphi 0, %s76
      %s100 = sphi 0, %s102
      %s103 = sphi 0, %s100
      %s104 = sphi 0, %s103
      %s120 = sphi 0, %s104
      %s126 = sphi 0, %s128
      %s129 = sphi 0, %s126
      %s130 = sphi 0, %s129
      %s146 = sphi 0, %s130
    $region4: #{tpu_custom_call.1} parent=1 // loop_header_branch
      %25 = sbr.rel (%p23) target = $region8
    $region5: #{tpu_custom_call.1} parent=1 // loop_body
      %s27 = ssub.s32 %s22, 1
      %s28 = ssub.s32 %s22, 2
      %s35 = sadd.s32 1, %s30
      %p36 = scmp.ge.s32.totalorder %s35, 1
      %s37 = scalar_select %p36, 0, %s35
      %s38 = sadd.s32 1, %s29
      %s39 = scalar_select %p36, %s38, %s29
      %p40 = scmp.ge.s32.totalorder %s39, 2
      %s41 = scalar_select %p40, 0, %s39
      %s42 = ssub.s32 %s29, %s41
      %s43 = ssub.s32 %s30, %s37
      %s44 = sor.u32 %s42, %s43
      %p45 = scmp.eq.s32.totalorder %s44, 0
      %s47 = sadd.s32 %s46, 1
      %s48 = scalar_select %p45, %s46, %s47
      %p51 = pneg %p45
      %p52 = scmp.eq.s32.totalorder %s22, 1
      %p53 = por %p51, %p52
      %p54 = scmp.ne.s32.totalorder %s46, %s49
      %p55 = scmp.eq.s32.totalorder %s22, 0
      %p56 = por %p54, %p55
      %p57 = scmp.ne.s32.totalorder %s46, %s49
      %p58 = scmp.eq.s32.totalorder %s27, 1
      %p59 = por %p57, %p58
      %p60 = scmp.ne.s32.totalorder %s49, %s50
      %p61 = scmp.eq.s32.totalorder %s27, 0
      %p62 = por %p60, %p61
      %p63 = scmp.ne.s32.totalorder %s49, %s50
      %p64 = scmp.eq.s32.totalorder %s28, 1
      %p65 = por %p63, %p64
      %p67 = scmp.ne.s32.totalorder %s50, %s66
      %p68 = scmp.eq.s32.totalorder %s28, 0
      %p69 = por %p67, %p68
      %s70 = ssub.s32 %s29, %s41
      %p71 = scmp.eq.s32.totalorder %s70, 0
      %s73 = sadd.s32 %s72, 1
      %s74 = scalar_select %p71, %s72, %s73
      %p77 = pneg %p71
      %p78 = scmp.eq.s32.totalorder %s22, 1
      %p79 = por %p77, %p78
      %p80 = scmp.ne.s32.totalorder %s72, %s75
      %p81 = scmp.eq.s32.totalorder %s22, 0
      %p82 = por %p80, %p81
      %p83 = scmp.ne.s32.totalorder %s72, %s75
      %p84 = scmp.eq.s32.totalorder %s27, 1
      %p85 = por %p83, %p84
      %p86 = scmp.ne.s32.totalorder %s75, %s76
      %p87 = scmp.eq.s32.totalorder %s27, 0
      %p88 = por %p86, %p87
      %p89 = scmp.ne.s32.totalorder %s75, %s76
      %p90 = scmp.eq.s32.totalorder %s28, 1
      %p91 = por %p89, %p90
      %p93 = scmp.ne.s32.totalorder %s76, %s92
      %p94 = scmp.eq.s32.totalorder %s28, 0
      %p95 = por %p93, %p94
      %s96 = ssub.s32 %s29, %s41
      %s97 = ssub.s32 %s30, %s37
      %s98 = sor.u32 %s96, %s97
      %p99 = scmp.eq.s32.totalorder %s98, 0
      %s101 = sadd.s32 %s100, 1
      %s102 = scalar_select %p99, %s100, %s101
      %p105 = pneg %p99
      %p106 = scmp.eq.s32.totalorder %s22, 1
      %p107 = por %p105, %p106
      %p108 = scmp.ne.s32.totalorder %s100, %s103
      %p109 = scmp.eq.s32.totalorder %s22, 0
      %p110 = por %p108, %p109
      %p111 = scmp.ne.s32.totalorder %s100, %s103
      %p112 = scmp.eq.s32.totalorder %s27, 1
      %p113 = por %p111, %p112
      %p114 = scmp.ne.s32.totalorder %s103, %s104
      %p115 = scmp.eq.s32.totalorder %s27, 0
      %p116 = por %p114, %p115
      %p117 = scmp.ne.s32.totalorder %s103, %s104
      %p118 = scmp.eq.s32.totalorder %s28, 1
      %p119 = por %p117, %p118
      %p121 = scmp.ne.s32.totalorder %s104, %s120
      %p122 = scmp.eq.s32.totalorder %s28, 0
      %p123 = por %p121, %p122
      %s124 = ssub.s32 %s29, %s41
      %p125 = scmp.eq.s32.totalorder %s124, 0
      %s127 = sadd.s32 %s126, 1
      %s128 = scalar_select %p125, %s126, %s127
      %p131 = pneg %p125
      %p132 = scmp.eq.s32.totalorder %s22, 1
      %p133 = por %p131, %p132
      %p134 = scmp.ne.s32.totalorder %s126, %s129
      %p135 = scmp.eq.s32.totalorder %s22, 0
      %p136 = por %p134, %p135
      %p137 = scmp.ne.s32.totalorder %s126, %s129
      %p138 = scmp.eq.s32.totalorder %s27, 1
      %p139 = por %p137, %p138
      %p140 = scmp.ne.s32.totalorder %s129, %s130
      %p141 = scmp.eq.s32.totalorder %s27, 0
      %p142 = por %p140, %p141
      %p143 = scmp.ne.s32.totalorder %s129, %s130
      %p144 = scmp.eq.s32.totalorder %s28, 1
      %p145 = por %p143, %p144
      %p147 = scmp.ne.s32.totalorder %s130, %s146
      %p148 = scmp.eq.s32.totalorder %s28, 0
      %p149 = por %p147, %p148
      %p150 = scmp.le.s32.totalorder 1, %s22
      %p151 = scmp.lt.s32.totalorder %s22, 3
      %p152 = pnand %p150, %p151
      %p153 = pneg %p152
      // Predicated region
      $region9: #{tpu_custom_call.1} parent=5 // pred_check
        _
      $region10: #{tpu_custom_call.1} parent=5 // pred_check_branch
        %155 = sbr.rel (%p152) target = $region12
      $region11: #{tpu_custom_call.1} parent=5 // pred_region
        %s156 = ssub.s32 %s22, 1
      $region12: #{tpu_custom_call.1} parent=5 // pred_fallthru
        _
      %p157 = scmp.lt.s32.totalorder %s22, 2
      // Predicated region
      $region13: #{tpu_custom_call.1} parent=5 // pred_check
        %p158 = pneg %p157
      $region14: #{tpu_custom_call.1} parent=5 // pred_check_branch
        %160 = sbr.rel (%p158) target = $region16
      $region15: #{tpu_custom_call.1} parent=5 // pred_region
        // Predicated region
        $region17: #{tpu_custom_call.1} parent=15 // pred_check
          %p161 = pneg %p56
        $region18: #{tpu_custom_call.1} parent=15 // pred_check_branch
          %163 = sbr.rel (%p161) target = $region20
        $region19: #{tpu_custom_call.1} parent=15 // pred_region
          %s164 = sand.u32 %s46, 1
          %s165 = scalar_lea.sflag [#allocation4], %s164
          %s166 = sand.u32 %s46, 1
          %s167 = smul.addr %s166, 8
          %s168 = scalar_lea.vmem [#allocation3], %s167
          %s170 = ssub.s32 128, 128
          %171 = vsyncadd %s165, %s170
          %s172 = sadd.s32 %s30, %s29
          %s173 = smul.addr %s172, 128
          %s174 = scalar_lea.hbm %s0, %s173
          %s176 = sshll.u32 %s168, 4
          %s177 = int_to_ptr.vmem [resolvable:$true] %s176
          %179 = dma.hbm_to_vmem [thread:$0]  %s174, 128, %s177, %s165
        $region20: #{tpu_custom_call.1} parent=15 // pred_fallthru
          _
        // Predicated region
        $region21: #{tpu_custom_call.1} parent=15 // pred_check
          %p180 = pneg %p82
        $region22: #{tpu_custom_call.1} parent=15 // pred_check_branch
          %182 = sbr.rel (%p180) target = $region24
        $region23: #{tpu_custom_call.1} parent=15 // pred_region
          %s183 = sand.u32 %s72, 1
          %s184 = scalar_lea.sflag [#allocation7], %s183
          %s185 = sand.u32 %s72, 1
          %s186 = smul.addr %s185, 8
          %s187 = scalar_lea.vmem [#allocation6], %s186
          %s189 = ssub.s32 128, 128
          %190 = vsyncadd %s184, %s189
          %s191 = smul.addr %s29, 128
          %s192 = scalar_lea.hbm %s1, %s191
          %s194 = sshll.u32 %s187, 4
          %s195 = int_to_ptr.vmem [resolvable:$true] %s194
          %197 = dma.hbm_to_vmem [thread:$0]  %s192, 128, %s195, %s184
        $region24: #{tpu_custom_call.1} parent=15 // pred_fallthru
          _
      $region16: #{tpu_custom_call.1} parent=5 // pred_fallthru
        _
      %p198 = scmp.le.s32.totalorder 1, %s22
      %p199 = scmp.lt.s32.totalorder %s22, 3
      %p200 = pnand %p198, %p199
      %p201 = pneg %p200
      // Predicated region
      $region25: #{tpu_custom_call.1} parent=5 // pred_check
        _
      $region26: #{tpu_custom_call.1} parent=5 // pred_check_branch
        %203 = sbr.rel (%p200) target = $region28
      $region27: #{tpu_custom_call.1} parent=5 // pred_region
        %s204 = ssub.s32 %s22, 1
        %s205 = sand.u32 %s49, 1
        %s206 = scalar_lea.sflag [#allocation4], %s205
        %s207 = sand.u32 %s49, 1
        %s208 = smul.addr %s207, 8
        %s209 = scalar_lea.vmem [#allocation3], %s208
        // Predicated region
        $region29: #{tpu_custom_call.1} parent=27 // pred_check
          %p210 = pneg %p62
        $region30: #{tpu_custom_call.1} parent=27 // pred_check_branch
          %212 = sbr.rel (%p210) target = $region32
        $region31: #{tpu_custom_call.1} parent=27 // pred_region
          %213 = dma.done %s206, 128
        $region32: #{tpu_custom_call.1} parent=27 // pred_fallthru
          _
        %s214 = sand.u32 %s75, 1
        %s215 = scalar_lea.sflag [#allocation7], %s214
        %s216 = sand.u32 %s75, 1
        %s217 = smul.addr %s216, 8
        %s218 = scalar_lea.vmem [#allocation6], %s217
        // Predicated region
        $region33: #{tpu_custom_call.1} parent=27 // pred_check
          %p219 = pneg %p88
        $region34: #{tpu_custom_call.1} parent=27 // pred_check_branch
          %221 = sbr.rel (%p219) target = $region36
        $region35: #{tpu_custom_call.1} parent=27 // pred_region
          %222 = dma.done %s215, 128
        $region36: #{tpu_custom_call.1} parent=27 // pred_fallthru
          _
        %s223 = sand.u32 %s49, 1
        %s224 = scalar_lea.sflag [#allocation4], %s223
        %s225 = sand.u32 %s49, 1
        %s226 = smul.addr %s225, 8
        %s227 = scalar_lea.vmem [#allocation3], %s226
        %p228 = pneg %p62
        %p229 = pneg %p59
        %s230 = sand.u32 %s75, 1
        %s231 = scalar_lea.sflag [#allocation7], %s230
        %s232 = sand.u32 %s75, 1
        %s233 = smul.addr %s232, 8
        %s234 = scalar_lea.vmem [#allocation6], %s233
        %p235 = pneg %p88
        %p236 = pneg %p85
        %p237 = pneg %p116
        %p238 = pneg %p113
        %s239 = sand.u32 %s103, 1
        %s240 = scalar_lea.sflag [#allocation5], %s239
        %s241 = sand.u32 %s103, 1
        %s242 = scalar_lea.vmem [#allocation8], %s241
        %p243 = pneg %p142
        %p244 = pneg %p139
        %s245 = sand.u32 %s129, 1
        %s246 = scalar_lea.sflag [#allocation10], %s245
        %s247 = sand.u32 %s129, 1
        %s248 = smul.addr %s247, 8
        %s249 = scalar_lea.vmem [#allocation9], %s248
        %p250 = scmp.eq.s32.totalorder %s32, 0
        // Predicated region
        $region37: #{tpu_custom_call.1} parent=27 // pred_check
          %p251 = pneg %p250
        $region38: #{tpu_custom_call.1} parent=27 // pred_check_branch
          %253 = sbr.rel (%p251) target = $region40
        $region39: #{tpu_custom_call.1} parent=27 // pred_region
          %254 = vst [vmem:[%s249] sm:$0xff] 1e+30
        $region40: #{tpu_custom_call.1} parent=27 // pred_fallthru
          _
        %255 = vst [vmem:[#allocation2] sm:$0xff] 1e+30
        %256 = vst [vmem:[#allocation2 + $0x8] sm:$0xff] 1e+30
        %257 = vst [vmem:[#allocation2 + $0x10] sm:$0xff] 1e+30
        %258 = vst [vmem:[#allocation2 + $0x18] sm:$0xff] 1e+30
        %259 = vst [vmem:[#allocation2 + $0x20] sm:$0xff] 1e+30
        %260 = vst [vmem:[#allocation2 + $0x28] sm:$0xff] 1e+30
        %261 = vst [vmem:[#allocation2 + $0x30] sm:$0xff] 1e+30
        %262 = vst [vmem:[#allocation2 + $0x38] sm:$0xff] 1e+30
        %263 = vst [vmem:[#allocation2 + $0x40] sm:$0xff] 1e+30
        %264 = vst [vmem:[#allocation2 + $0x48] sm:$0xff] 1e+30
        %265 = vst [vmem:[#allocation2 + $0x50] sm:$0xff] 1e+30
        %266 = vst [vmem:[#allocation2 + $0x58] sm:$0xff] 1e+30
        %267 = vst [vmem:[#allocation2 + $0x60] sm:$0xff] 1e+30
        %268 = vst [vmem:[#allocation2 + $0x68] sm:$0xff] 1e+30
        %269 = vst [vmem:[#allocation2 + $0x70] sm:$0xff] 1e+30
        %270 = vst [vmem:[#allocation2 + $0x78] sm:$0xff] 1e+30
        %v271 = vld [vmem:[%s209] sm:$0xff]
        %v272 = vld [vmem:[%s218] sm:$0xff]
        %273 = vxpose.xlu0.b32.start [1/16] %v271, 128
        %274 = vxpose.xlu0.b32.cont [2/16] 0.0, 128
        %275 = vxpose.xlu0.b32.cont [3/16] 0.0, 128
        %276 = vxpose.xlu0.b32.cont [4/16] 0.0, 128
        %277 = vxpose.xlu0.b32.cont [5/16] 0.0, 128
        %278 = vxpose.xlu0.b32.cont [6/16] 0.0, 128
        %279 = vxpose.xlu0.b32.cont [7/16] 0.0, 128
        %280 = vxpose.xlu0.b32.cont [8/16] 0.0, 128
        %281 = vxpose.xlu0.b32.cont [9/16] 0.0, 128
        %282 = vxpose.xlu0.b32.cont [10/16] 0.0, 128
        %283 = vxpose.xlu0.b32.cont [11/16] 0.0, 128
        %284 = vxpose.xlu0.b32.cont [12/16] 0.0, 128
        %285 = vxpose.xlu0.b32.cont [13/16] 0.0, 128
        %286 = vxpose.xlu0.b32.cont [14/16] 0.0, 128
        %287 = vxpose.xlu0.b32.cont [15/16] 0.0, 128
        %288 = vxpose.xlu0.b32.end [16/16] 0.0, 128
        %v289 = vpop.trf.xlu0
        %v290 = vpop.trf.xlu0
        %v291 = vpop.trf.xlu0
        %v292 = vpop.trf.xlu0
        %v293 = vpop.trf.xlu0
        %v294 = vpop.trf.xlu0
        %v295 = vpop.trf.xlu0
        %v296 = vpop.trf.xlu0
        %v297 = vpop.trf.xlu0
        %v298 = vpop.trf.xlu0
        %v299 = vpop.trf.xlu0
        %v300 = vpop.trf.xlu0
        %v301 = vpop.trf.xlu0
        %v302 = vpop.trf.xlu0
        %v303 = vpop.trf.xlu0
        %v304 = vpop.trf.xlu0
        %vm305 = vcmask 64512
        %v307 = vsel %vm305, %v289, 0
        %v310 = vsel %vm305, %v290, 0
        %v313 = vsel %vm305, %v291, 0
        %v316 = vsel %vm305, %v292, 0
        %v319 = vsel %vm305, %v293, 0
        %v322 = vsel %vm305, %v294, 0
        %v325 = vsel %vm305, %v295, 0
        %v328 = vsel %vm305, %v296, 0
        %v331 = vsel %vm305, %v297, 0
        %v334 = vsel %vm305, %v298, 0
        %v337 = vsel %vm305, %v299, 0
        %v340 = vsel %vm305, %v300, 0
        %v343 = vsel %vm305, %v301, 0
        %v346 = vsel %vm305, %v302, 0
        %v349 = vsel %vm305, %v303, 0
        %v352 = vsel %vm305, %v304, 0
        %354 = vmatprep.subr.mxu0 0.0
        %355 = vmatpush1.msra.mxu0 %v272
        %356 = vmatprep.subr.mxu0 0.0
        %357 = vmatpush1.msra.mxu0 0.0
        %358 = vmatprep.subr.mxu0 0.0
        %359 = vmatpush1.msra.mxu0 0.0
        %360 = vmatprep.subr.mxu0 0.0
        %361 = vmatpush1.msra.mxu0 0.0
        %362 = vmatprep.subr.mxu0 0.0
        %363 = vmatpush1.msra.mxu0 0.0
        %364 = vmatprep.subr.mxu0 0.0
        %365 = vmatpush1.msra.mxu0 0.0
        %366 = vmatprep.subr.mxu0 0.0
        %367 = vmatpush1.msra.mxu0 0.0
        %368 = vmatprep.subr.mxu0 0.0
        %369 = vmatpush1.msra.mxu0 0.0
        %370 = vmatprep.subr.mxu0 0.0
        %371 = vmatpush1.msra.mxu0 0.0
        %372 = vmatprep.subr.mxu0 0.0
        %373 = vmatpush1.msra.mxu0 0.0
        %374 = vmatprep.subr.mxu0 0.0
        %375 = vmatpush1.msra.mxu0 0.0
        %376 = vmatprep.subr.mxu0 0.0
        %377 = vmatpush1.msra.mxu0 0.0
        %378 = vmatprep.subr.mxu0 0.0
        %379 = vmatpush1.msra.mxu0 0.0
        %380 = vmatprep.subr.mxu0 0.0
        %381 = vmatpush1.msra.mxu0 0.0
        %382 = vmatprep.subr.mxu0 0.0
        %383 = vmatpush1.msra.mxu0 0.0
        %384 = vmatprep.subr.mxu0 0.0
        %385 = vmatpush1.msra.mxu0 0.0
        %386 = vmatprep.subr.mxu0 0.0
        %387 = vmatpush1.msra.mxu0 0.0
        %388 = vmatprep.subr.mxu0 0.0
        %389 = vmatpush1.msra.mxu0 0.0
        %390 = vmatprep.subr.mxu0 0.0
        %391 = vmatpush1.msra.mxu0 0.0
        %392 = vmatprep.subr.mxu0 0.0
        %393 = vmatpush1.msra.mxu0 0.0
        %394 = vmatprep.subr.mxu0 0.0
        %395 = vmatpush1.msra.mxu0 0.0
        %396 = vmatprep.subr.mxu0 0.0
        %397 = vmatpush1.msra.mxu0 0.0
        %398 = vmatprep.subr.mxu0 0.0
        %399 = vmatpush1.msra.mxu0 0.0
        %400 = vmatprep.subr.mxu0 0.0
        %401 = vmatpush1.msra.mxu0 0.0
        %402 = vmatprep.subr.mxu0 0.0
        %403 = vmatpush1.msra.mxu0 0.0
        %404 = vmatprep.subr.mxu0 0.0
        %405 = vmatpush1.msra.mxu0 0.0
        %406 = vmatprep.subr.mxu0 0.0
        %407 = vmatpush1.msra.mxu0 0.0
        %408 = vmatprep.subr.mxu0 0.0
        %409 = vmatpush1.msra.mxu0 0.0
        %410 = vmatprep.subr.mxu0 0.0
        %411 = vmatpush1.msra.mxu0 0.0
        %412 = vmatprep.subr.mxu0 0.0
        %413 = vmatpush1.msra.mxu0 0.0
        %414 = vmatprep.subr.mxu0 0.0
        %415 = vmatpush1.msra.mxu0 0.0
        %416 = vmatprep.subr.mxu0 0.0
        %417 = vmatpush1.msra.mxu0 0.0
        %418 = vmatprep.mubr.f32.mxu0 0.0
        %419 = vmatmul.mubr.f32.gmra.mrb[0].mxu0 %v307
        %v420 = vpop.f32.mrb[0].mxu0
        %v421 = vadd.f32 0.0, %v420
        %v422 = vpop.f32.mrb[0].mxu0
        %423 = vmatprep.mubr.f32.mxu0 0.0
        %424 = vmatmul.mubr.f32.gmra.mrb[0].mxu0 %v310
        %v425 = vpop.f32.mrb[0].mxu0
        %v426 = vadd.f32 0.0, %v425
        %v427 = vpop.f32.mrb[0].mxu0
        %428 = vmatprep.mubr.f32.mxu0 0.0
        %429 = vmatmul.mubr.f32.gmra.mrb[0].mxu0 %v313
        %v430 = vpop.f32.mrb[0].mxu0
        %v431 = vadd.f32 0.0, %v430
        %v432 = vpop.f32.mrb[0].mxu0
        %433 = vmatprep.mubr.f32.mxu0 0.0
        %434 = vmatmul.mubr.f32.gmra.mrb[0].mxu0 %v316
        %v435 = vpop.f32.mrb[0].mxu0
        %v436 = vadd.f32 0.0, %v435
        %v437 = vpop.f32.mrb[0].mxu0
        %438 = vmatprep.mubr.f32.mxu0 0.0
        %439 = vmatmul.mubr.f32.gmra.mrb[0].mxu0 %v319
        %v440 = vpop.f32.mrb[0].mxu0
        %v441 = vadd.f32 0.0, %v440
        %v442 = vpop.f32.mrb[0].mxu0
        %443 = vmatprep.mubr.f32.mxu0 0.0
        %444 = vmatmul.mubr.f32.gmra.mrb[0].mxu0 %v322
        %v445 = vpop.f32.mrb[0].mxu0
        %v446 = vadd.f32 0.0, %v445
        %v447 = vpop.f32.mrb[0].mxu0
        %448 = vmatprep.mubr.f32.mxu0 0.0
        %449 = vmatmul.mubr.f32.gmra.mrb[0].mxu0 %v325
        %v450 = vpop.f32.mrb[0].mxu0
        %v451 = vadd.f32 0.0, %v450
        %v452 = vpop.f32.mrb[0].mxu0
        %453 = vmatprep.mubr.f32.mxu0 0.0
        %454 = vmatmul.mubr.f32.gmra.mrb[0].mxu0 %v328
        %v455 = vpop.f32.mrb[0].mxu0
        %v456 = vadd.f32 0.0, %v455
        %v457 = vpop.f32.mrb[0].mxu0
        %458 = vmatprep.mubr.f32.mxu0 0.0
        %459 = vmatmul.mubr.f32.gmra.mrb[0].mxu0 %v331
        %v460 = vpop.f32.mrb[0].mxu0
        %v461 = vadd.f32 0.0, %v460
        %v462 = vpop.f32.mrb[0].mxu0
        %463 = vmatprep.mubr.f32.mxu0 0.0
        %464 = vmatmul.mubr.f32.gmra.mrb[0].mxu0 %v334
        %v465 = vpop.f32.mrb[0].mxu0
        %v466 = vadd.f32 0.0, %v465
        %v467 = vpop.f32.mrb[0].mxu0
        %468 = vmatprep.mubr.f32.mxu0 0.0
        %469 = vmatmul.mubr.f32.gmra.mrb[0].mxu0 %v337
        %v470 = vpop.f32.mrb[0].mxu0
        %v471 = vadd.f32 0.0, %v470
        %v472 = vpop.f32.mrb[0].mxu0
        %473 = vmatprep.mubr.f32.mxu0 0.0
        %474 = vmatmul.mubr.f32.gmra.mrb[0].mxu0 %v340
        %v475 = vpop.f32.mrb[0].mxu0
        %v476 = vadd.f32 0.0, %v475
        %v477 = vpop.f32.mrb[0].mxu0
        %478 = vmatprep.mubr.f32.mxu0 0.0
        %479 = vmatmul.mubr.f32.gmra.mrb[0].mxu0 %v343
        %v480 = vpop.f32.mrb[0].mxu0
        %v481 = vadd.f32 0.0, %v480
        %v482 = vpop.f32.mrb[0].mxu0
        %483 = vmatprep.mubr.f32.mxu0 0.0
        %484 = vmatmul.mubr.f32.gmra.mrb[0].mxu0 %v346
        %v485 = vpop.f32.mrb[0].mxu0
        %v486 = vadd.f32 0.0, %v485
        %v487 = vpop.f32.mrb[0].mxu0
        %488 = vmatprep.mubr.f32.mxu0 0.0
        %489 = vmatmul.mubr.f32.gmra.mrb[0].mxu0 %v349
        %v490 = vpop.f32.mrb[0].mxu0
        %v491 = vadd.f32 0.0, %v490
        %v492 = vpop.f32.mrb[0].mxu0
        %493 = vmatprep.mubr.f32.mxu0 0.0
        %494 = vmatmul.mubr.f32.gmra.mrb[0].mxu0 %v352
        %v495 = vpop.f32.mrb[0].mxu0
        %v496 = vadd.f32 0.0, %v495
        %v497 = vpop.f32.mrb[0].mxu0
        %498 = vdwg.mxu0
        %v499 = vld [vmem:[#allocation2] sm:$0xff]
        %v500 = vld [vmem:[#allocation2 + $0x8] sm:$0xff]
        %v501 = vld [vmem:[#allocation2 + $0x10] sm:$0xff]
        %v502 = vld [vmem:[#allocation2 + $0x18] sm:$0xff]
        %v503 = vld [vmem:[#allocation2 + $0x20] sm:$0xff]
        %v504 = vld [vmem:[#allocation2 + $0x28] sm:$0xff]
        %v505 = vld [vmem:[#allocation2 + $0x30] sm:$0xff]
        %v506 = vld [vmem:[#allocation2 + $0x38] sm:$0xff]
        %v507 = vld [vmem:[#allocation2 + $0x40] sm:$0xff]
        %v508 = vld [vmem:[#allocation2 + $0x48] sm:$0xff]
        %v509 = vld [vmem:[#allocation2 + $0x50] sm:$0xff]
        %v510 = vld [vmem:[#allocation2 + $0x58] sm:$0xff]
        %v511 = vld [vmem:[#allocation2 + $0x60] sm:$0xff]
        %v512 = vld [vmem:[#allocation2 + $0x68] sm:$0xff]
        %v513 = vld [vmem:[#allocation2 + $0x70] sm:$0xff]
        %v514 = vld [vmem:[#allocation2 + $0x78] sm:$0xff]
        %v515 = vmin.f32 %v499, %v421
        %v516 = vmin.f32 %v500, %v426
        %v517 = vmin.f32 %v501, %v431
        %v518 = vmin.f32 %v502, %v436
        %v519 = vmin.f32 %v503, %v441
        %v520 = vmin.f32 %v504, %v446
        %v521 = vmin.f32 %v505, %v451
        %v522 = vmin.f32 %v506, %v456
        %v523 = vmin.f32 %v507, %v461
        %v524 = vmin.f32 %v508, %v466
        %v525 = vmin.f32 %v509, %v471
        %v526 = vmin.f32 %v510, %v476
        %v527 = vmin.f32 %v511, %v481
        %v528 = vmin.f32 %v512, %v486
        %v529 = vmin.f32 %v513, %v491
        %v530 = vmin.f32 %v514, %v496
        %531 = vst [vmem:[#allocation2] sm:$0xff] %v515
        %532 = vst [vmem:[#allocation2 + $0x8] sm:$0xff] %v516
        %533 = vst [vmem:[#allocation2 + $0x10] sm:$0xff] %v517
        %534 = vst [vmem:[#allocation2 + $0x18] sm:$0xff] %v518
        %535 = vst [vmem:[#allocation2 + $0x20] sm:$0xff] %v519
        %536 = vst [vmem:[#allocation2 + $0x28] sm:$0xff] %v520
        %537 = vst [vmem:[#allocation2 + $0x30] sm:$0xff] %v521
        %538 = vst [vmem:[#allocation2 + $0x38] sm:$0xff] %v522
        %539 = vst [vmem:[#allocation2 + $0x40] sm:$0xff] %v523
        %540 = vst [vmem:[#allocation2 + $0x48] sm:$0xff] %v524
        %541 = vst [vmem:[#allocation2 + $0x50] sm:$0xff] %v525
        %542 = vst [vmem:[#allocation2 + $0x58] sm:$0xff] %v526
        %543 = vst [vmem:[#allocation2 + $0x60] sm:$0xff] %v527
        %544 = vst [vmem:[#allocation2 + $0x68] sm:$0xff] %v528
        %545 = vst [vmem:[#allocation2 + $0x70] sm:$0xff] %v529
        %546 = vst [vmem:[#allocation2 + $0x78] sm:$0xff] %v530
        %v547 = vmin.f32 %v421, %v426
        %v548 = vmin.f32 %v547, %v431
        %v549 = vmin.f32 %v548, %v436
        %v550 = vmin.f32 %v549, %v441
        %v551 = vmin.f32 %v550, %v446
        %v552 = vmin.f32 %v551, %v451
        %v553 = vmin.f32 %v552, %v456
        %v554 = vmin.f32 %v553, %v461
        %v555 = vmin.f32 %v554, %v466
        %v556 = vmin.f32 %v555, %v471
        %v557 = vmin.f32 %v556, %v476
        %v558 = vmin.f32 %v557, %v481
        %v559 = vmin.f32 %v558, %v486
        %v560 = vmin.f32 %v559, %v491
        %v561 = vmin.f32 %v560, %v496
        %v562 = vld [vmem:[%s249] sm:$0xff]
        %v563 = vmin.f32 %v562, %v561
        %564 = vst [vmem:[%s249] sm:$0xff] %v563
        %v565 = vld [vmem:[#allocation2] sm:$0xff]
        %v566 = vld [vmem:[#allocation2 + $0x8] sm:$0xff]
        %v567 = vld [vmem:[#allocation2 + $0x10] sm:$0xff]
        %v568 = vld [vmem:[#allocation2 + $0x18] sm:$0xff]
        %v569 = vld [vmem:[#allocation2 + $0x20] sm:$0xff]
        %v570 = vld [vmem:[#allocation2 + $0x28] sm:$0xff]
        %v571 = vld [vmem:[#allocation2 + $0x30] sm:$0xff]
        %v572 = vld [vmem:[#allocation2 + $0x38] sm:$0xff]
        %v573 = vld [vmem:[#allocation2 + $0x40] sm:$0xff]
        %v574 = vld [vmem:[#allocation2 + $0x48] sm:$0xff]
        %v575 = vld [vmem:[#allocation2 + $0x50] sm:$0xff]
        %v576 = vld [vmem:[#allocation2 + $0x58] sm:$0xff]
        %v577 = vld [vmem:[#allocation2 + $0x60] sm:$0xff]
        %v578 = vld [vmem:[#allocation2 + $0x68] sm:$0xff]
        %v579 = vld [vmem:[#allocation2 + $0x70] sm:$0xff]
        %v580 = vld [vmem:[#allocation2 + $0x78] sm:$0xff]
        %581 = vmin.xlane.f32.xlu0 %v565
        %v582 = vpop.xlane.xlu0 %581
        %583 = vmin.xlane.f32.xlu0 %v566
        %v584 = vpop.xlane.xlu0 %583
        %585 = vmin.xlane.f32.xlu0 %v567
        %v586 = vpop.xlane.xlu0 %585
        %587 = vmin.xlane.f32.xlu0 %v568
        %v588 = vpop.xlane.xlu0 %587
        %589 = vmin.xlane.f32.xlu0 %v569
        %v590 = vpop.xlane.xlu0 %589
        %591 = vmin.xlane.f32.xlu0 %v570
        %v592 = vpop.xlane.xlu0 %591
        %593 = vmin.xlane.f32.xlu0 %v571
        %v594 = vpop.xlane.xlu0 %593
        %595 = vmin.xlane.f32.xlu0 %v572
        %v596 = vpop.xlane.xlu0 %595
        %597 = vmin.xlane.f32.xlu0 %v573
        %v598 = vpop.xlane.xlu0 %597
        %599 = vmin.xlane.f32.xlu0 %v574
        %v600 = vpop.xlane.xlu0 %599
        %601 = vmin.xlane.f32.xlu0 %v575
        %v602 = vpop.xlane.xlu0 %601
        %603 = vmin.xlane.f32.xlu0 %v576
        %v604 = vpop.xlane.xlu0 %603
        %605 = vmin.xlane.f32.xlu0 %v577
        %v606 = vpop.xlane.xlu0 %605
        %607 = vmin.xlane.f32.xlu0 %v578
        %v608 = vpop.xlane.xlu0 %607
        %609 = vmin.xlane.f32.xlu0 %v579
        %v610 = vpop.xlane.xlu0 %609
        %611 = vmin.xlane.f32.xlu0 %v580
        %v612 = vpop.xlane.xlu0 %611
        %v613 = vmax.f32 %v582, 0.0
        %v614 = vmax.f32 %v584, 0.0
        %v615 = vmax.f32 %v586, 0.0
        %v616 = vmax.f32 %v588, 0.0
        %v617 = vmax.f32 %v590, 0.0
        %v618 = vmax.f32 %v592, 0.0
        %v619 = vmax.f32 %v594, 0.0
        %v620 = vmax.f32 %v596, 0.0
        %v621 = vmax.f32 %v598, 0.0
        %v622 = vmax.f32 %v600, 0.0
        %v623 = vmax.f32 %v602, 0.0
        %v624 = vmax.f32 %v604, 0.0
        %v625 = vmax.f32 %v606, 0.0
        %v626 = vmax.f32 %v608, 0.0
        %v627 = vmax.f32 %v610, 0.0
        %v628 = vmax.f32 %v612, 0.0
        %v645 = vlaneseq
        %v646 = vand.u32 %v645, 127
        %v647 = vlaneseq
        %v648 = vshrl.u32 %v647, 7
        %v649 = vsub.s32 %v646, %v648
        %v650 = vrot.slane %v613, %v649
        %v651 = vadd.s32 %v646, 4294967288
        %v652 = vlaneseq
        %v653 = vshrl.u32 %v652, 7
        %v654 = vsub.s32 %v651, %v653
        %v655 = vrot.slane %v614, %v654
        %vm656 = vcmask 130112
        %v657 = vsel %vm656, %v655, %v650
        %v658 = vadd.s32 %v646, 4294967280
        %v659 = vlaneseq
        %v660 = vshrl.u32 %v659, 7
        %v661 = vsub.s32 %v658, %v660
        %v662 = vrot.slane %v615, %v661
        %vm663 = vcmask 195712
        %v664 = vsel %vm663, %v662, %v657
        %v665 = vadd.s32 %v646, 4294967272
        %v666 = vlaneseq
        %v667 = vshrl.u32 %v666, 7
        %v668 = vsub.s32 %v665, %v667
        %v669 = vrot.slane %v616, %v668
        %vm670 = vcmask 261312
        %v671 = vsel %vm670, %v669, %v664
        %v672 = vadd.s32 %v646, 4294967264
        %v673 = vlaneseq
        %v674 = vshrl.u32 %v673, 7
        %v675 = vsub.s32 %v672, %v674
        %v676 = vrot.slane %v617, %v675
        %vm677 = vcmask 326912
        %v678 = vsel %vm677, %v676, %v671
        %v679 = vadd.s32 %v646, 4294967256
        %v680 = vlaneseq
        %v681 = vshrl.u32 %v680, 7
        %v682 = vsub.s32 %v679, %v681
        %v683 = vrot.slane %v618, %v682
        %vm684 = vcmask 392512
        %v685 = vsel %vm684, %v683, %v678
        %v686 = vadd.s32 %v646, 4294967248
        %v687 = vlaneseq
        %v688 = vshrl.u32 %v687, 7
        %v689 = vsub.s32 %v686, %v688
        %v690 = vrot.slane %v619, %v689
        %vm691 = vcmask 458112
        %v692 = vsel %vm691, %v690, %v685
        %v693 = vadd.s32 %v646, 4294967240
        %v694 = vlaneseq
        %v695 = vshrl.u32 %v694, 7
        %v696 = vsub.s32 %v693, %v695
        %v697 = vrot.slane %v620, %v696
        %vm698 = vcmask 523712
        %v699 = vsel %vm698, %v697, %v692
        %v700 = vadd.s32 %v646, 4294967232
        %v701 = vlaneseq
        %v702 = vshrl.u32 %v701, 7
        %v703 = vsub.s32 %v700, %v702
        %v704 = vrot.slane %v621, %v703
        %vm705 = vcmask 589312
        %v706 = vsel %vm705, %v704, %v699
        %v707 = vadd.s32 %v646, 4294967224
        %v708 = vlaneseq
        %v709 = vshrl.u32 %v708, 7
        %v710 = vsub.s32 %v707, %v709
        %v711 = vrot.slane %v622, %v710
        %vm712 = vcmask 654912
        %v713 = vsel %vm712, %v711, %v706
        %v714 = vadd.s32 %v646, 4294967216
        %v715 = vlaneseq
        %v716 = vshrl.u32 %v715, 7
        %v717 = vsub.s32 %v714, %v716
        %v718 = vrot.slane %v623, %v717
        %vm719 = vcmask 720512
        %v720 = vsel %vm719, %v718, %v713
        %v721 = vadd.s32 %v646, 4294967208
        %v722 = vlaneseq
        %v723 = vshrl.u32 %v722, 7
        %v724 = vsub.s32 %v721, %v723
        %v725 = vrot.slane %v624, %v724
        %vm726 = vcmask 786112
        %v727 = vsel %vm726, %v725, %v720
        %v728 = vadd.s32 %v646, 4294967200
        %v729 = vlaneseq
        %v730 = vshrl.u32 %v729, 7
        %v731 = vsub.s32 %v728, %v730
        %v732 = vrot.slane %v625, %v731
        %vm733 = vcmask 851712
        %v734 = vsel %vm733, %v732, %v727
        %v735 = vadd.s32 %v646, 4294967192
        %v736 = vlaneseq
        %v737 = vshrl.u32 %v736, 7
        %v738 = vsub.s32 %v735, %v737
        %v739 = vrot.slane %v626, %v738
        %vm740 = vcmask 917312
        %v741 = vsel %vm740, %v739, %v734
        %v742 = vadd.s32 %v646, 4294967184
        %v743 = vlaneseq
        %v744 = vshrl.u32 %v743, 7
        %v745 = vsub.s32 %v742, %v744
        %v746 = vrot.slane %v627, %v745
        %vm747 = vcmask 982912
        %v748 = vsel %vm747, %v746, %v741
        %v749 = vadd.s32 %v646, 4294967176
        %v750 = vlaneseq
        %v751 = vshrl.u32 %v750, 7
        %v752 = vsub.s32 %v749, %v751
        %v753 = vrot.slane %v628, %v752
        %vm754 = vcmask 1048512
        %v755 = vsel %vm754, %v753, %v748
        %757 = vst [vmem:[%s242] sm:$0x1] %v755
        %s758 = sand.u32 %s103, 1
        %s759 = scalar_lea.sflag [#allocation5], %s758
        %s760 = sand.u32 %s103, 1
        %s761 = scalar_lea.vmem [#allocation8], %s760
        %s762 = sand.u32 %s129, 1
        %s763 = scalar_lea.sflag [#allocation10], %s762
        %s764 = sand.u32 %s129, 1
        %s765 = smul.addr %s764, 8
        %s766 = scalar_lea.vmem [#allocation9], %s765
        // Predicated region
        $region41: #{tpu_custom_call.1} parent=27 // pred_check
          %p767 = pneg %p113
        $region42: #{tpu_custom_call.1} parent=27 // pred_check_branch
          %769 = sbr.rel (%p767) target = $region44
        $region43: #{tpu_custom_call.1} parent=27 // pred_region
          %s771 = ssub.s32 16, 16
          %772 = vsyncadd %s759, %s771
          %s773 = sadd.s32 %s32, %s31
          %s774 = smul.addr %s773, 16
          %s775 = scalar_lea.hbm %s2, %s774
          %s777 = sshll.u32 %s761, 4
          %s778 = int_to_ptr.vmem [resolvable:$true] %s777
          %780 = dma.vmem_to_hbm [thread:$0]  %s778, 16, %s775, %s759
        $region44: #{tpu_custom_call.1} parent=27 // pred_fallthru
          _
        // Predicated region
        $region45: #{tpu_custom_call.1} parent=27 // pred_check
          %p781 = pneg %p139
        $region46: #{tpu_custom_call.1} parent=27 // pred_check_branch
          %783 = sbr.rel (%p781) target = $region48
        $region47: #{tpu_custom_call.1} parent=27 // pred_region
          %s785 = ssub.s32 128, 128
          %786 = vsyncadd %s763, %s785
          %s787 = smul.addr %s31, 128
          %s788 = scalar_lea.hbm %s3, %s787
          %s790 = sshll.u32 %s766, 4
          %s791 = int_to_ptr.vmem [resolvable:$true] %s790
          %793 = dma.vmem_to_hbm [thread:$0]  %s791, 128, %s788, %s763
        $region48: #{tpu_custom_call.1} parent=27 // pred_fallthru
          _
      $region28: #{tpu_custom_call.1} parent=5 // pred_fallthru
        _
      %p794 = scmp.le.s32.totalorder 2, %s22
      // Predicated region
      $region49: #{tpu_custom_call.1} parent=5 // pred_check
        %p795 = pneg %p794
      $region50: #{tpu_custom_call.1} parent=5 // pred_check_branch
        %797 = sbr.rel (%p795) target = $region52
      $region51: #{tpu_custom_call.1} parent=5 // pred_region
        %s798 = ssub.s32 %s22, 2
        // Predicated region
        $region53: #{tpu_custom_call.1} parent=51 // pred_check
          %p799 = pneg %p119
        $region54: #{tpu_custom_call.1} parent=51 // pred_check_branch
          %801 = sbr.rel (%p799) target = $region56
        $region55: #{tpu_custom_call.1} parent=51 // pred_region
          %s802 = sand.u32 %s104, 1
          %s803 = scalar_lea.sflag [#allocation5], %s802
          %s804 = sand.u32 %s104, 1
          %s805 = scalar_lea.vmem [#allocation8], %s804
          %806 = dma.done %s803, 16
        $region56: #{tpu_custom_call.1} parent=51 // pred_fallthru
          _
        // Predicated region
        $region57: #{tpu_custom_call.1} parent=51 // pred_check
          %p807 = pneg %p145
        $region58: #{tpu_custom_call.1} parent=51 // pred_check_branch
          %809 = sbr.rel (%p807) target = $region60
        $region59: #{tpu_custom_call.1} parent=51 // pred_region
          %s810 = sand.u32 %s130, 1
          %s811 = scalar_lea.sflag [#allocation10], %s810
          %s812 = sand.u32 %s130, 1
          %s813 = smul.addr %s812, 8
          %s814 = scalar_lea.vmem [#allocation9], %s813
          %815 = dma.done %s811, 128
        $region60: #{tpu_custom_call.1} parent=51 // pred_fallthru
          _
      $region52: #{tpu_custom_call.1} parent=5 // pred_fallthru
        _
    $region6: #{tpu_custom_call.1} parent=1 // loop_footer
      %s26 = sadd.s32 1, %s22
    $region7: #{tpu_custom_call.1} parent=1 // loop_footer_branch
      %21 = sbr.rel target = $region3
    $region8: #{tpu_custom_call.1} parent=1 // loop_exit
      _
    %816 = vsyncpa [#allocation4], 1
    %s817 = scalar_lea.sflag [#allocation4], 1
    %818 = vsyncpa %s817, 1
    %819 = vsyncpa [#allocation7], 1
    %s820 = scalar_lea.sflag [#allocation7], 1
    %821 = vsyncpa %s820, 1
    %822 = vsyncpa [#allocation5], 1
    %s823 = scalar_lea.sflag [#allocation5], 1
    %824 = vsyncpa %s823, 1
    %825 = vsyncpa [#allocation10], 1
    %s826 = scalar_lea.sflag [#allocation10], 1
    %827 = vsyncpa %s826, 1

</llo_original>
